<compile_context>
chip_gen: v7x
topology: tpu7x:2x2x1
jax: 0.10.0
libtpu: 0.0.40
codegen_flags: <defaults>
</compile_context>

<pallas_src>
import functools
import math

import jax
import jax.numpy as jnp
from jax.experimental import pallas as pl
from jax.experimental.pallas import tpu as pltpu


# -----------------------------------------------------------------------------
# Phase 1: h = x @ w1 per tile; accumulate per-feature sum(h), sum(h*h).
# -----------------------------------------------------------------------------
def _stats_kernel(x_ref, w1_ref, h_ref, stats_ref):
    h = jnp.dot(x_ref[...], w1_ref[...],
                preferred_element_type=jnp.float32)          # [TILE_N, H]
    h_ref[...] = h                                           # reused by phase 2

    s1 = jnp.sum(h, axis=0, keepdims=True)                   # [1, H]
    s2 = jnp.sum(h * h, axis=0, keepdims=True)               # [1, H]

    @pl.when(pl.program_id(0) == 0)
    def _():
        stats_ref[...] = jnp.zeros_like(stats_ref)

    stats_ref[0:1, :] += s1
    stats_ref[1:2, :] += s2


# -----------------------------------------------------------------------------
# Phase 2: BatchNorm(train) -> ReLU -> linear2 (VPU mul+reduce) -> sigmoid.
# -----------------------------------------------------------------------------
def _apply_kernel(h_ref, params_ref, stats_ref, o_ref, *, n_rows, c_dim, eps):
    h = h_ref[...]                                           # [TILE_N, H]

    stats = stats_ref[...]                                   # [2, H]
    inv_n = 1.0 / float(n_rows)
    mean = stats[0:1, :] * inv_n                             # [1, H]
    var = stats[1:2, :] * inv_n - mean * mean                # E[h^2] - mean^2
    inv_std = jax.lax.rsqrt(var + eps)                       # EUP

    params = params_ref[...]                                 # [3 + C, H]
    gamma = params[0:1, :]
    beta = params[1:2, :]
    b2 = params[2:3, 0:c_dim]                                # [1, C]

    hn = (h - mean) * (inv_std * gamma) + beta
    hr = jnp.maximum(hn, 0.0)                                # ReLU

    # Second linear: K=H=16, C tiny -> keep it off the MXU (VPU multiply + XLU reduce).
    cols = [jnp.sum(hr * params[3 + c:4 + c, :], axis=-1, keepdims=True)
            for c in range(c_dim)]
    y = cols[0] if c_dim == 1 else jnp.concatenate(cols, axis=-1)
    y = y + b2                                               # [TILE_N, C]

    # sigmoid(y) == 0.5 * (tanh(0.5 * y) + 1): single EUP op, no VALU divide.
    o_ref[...] = 0.5 * (jnp.tanh(0.5 * y) + 1.0)


def _round_up(v, m):
    return (v + m - 1) // m * m


def node_classifier_forward(x, w1, b1, gamma, beta, w2, b2, *, tile_n=512, eps=1e-5):
    """x: [N, F] f32 -> sigmoid(linear2(relu(BN_train(linear1(x))))) : [N, C] f32.

    b1 is accepted (to mirror the PyTorch module) but unused: the linear1 bias cancels
    under training-mode BatchNorm's batch-mean subtraction.
    """
    del b1
    n, f = x.shape
    h_dim = w1.shape[1]
    c_dim = w2.shape[1]
    if c_dim > h_dim:
        raise ValueError("parameter packing assumes cat_dim <= hidden_dim")

    # Row tile: multiple of 8, as large as reasonable; pad N (zero rows contribute
    # exactly 0 to sum(h)/sum(h*h) because the kernel carries no linear1 bias).
    tile_n = max(8, _round_up(min(tile_n, _round_up(n, 8)), 8))
    n_pad = _round_up(n, tile_n)
    num_tiles = n_pad // tile_n
    if n_pad != n:
        x = jnp.pad(x, ((0, n_pad - n), (0, 0)))

    x = x.astype(jnp.float32)
    w1 = w1.astype(jnp.float32)

    # Pack the small parameters into one array (one DMA): rows = [gamma, beta, b2pad, w2.T].
    b2_row = jnp.zeros((1, h_dim), jnp.float32).at[0, :c_dim].set(
        b2.astype(jnp.float32).reshape(-1))
    packed = jnp.concatenate(
        [gamma.astype(jnp.float32).reshape(1, h_dim),
         beta.astype(jnp.float32).reshape(1, h_dim),
         b2_row,
         w2.astype(jnp.float32).T], axis=0)                  # [3 + C, H]

    full = lambda shape: pl.BlockSpec(shape, lambda i, _s=shape: (0,) * len(_s))
    x_spec = pl.BlockSpec((tile_n, f), lambda i: (i, 0))
    h_spec = pl.BlockSpec((tile_n, h_dim), lambda i: (i, 0))

    mm_flops = 2 * n_pad * f * h_dim
    x_bytes = n_pad * f * 4
    w1_bytes = f * h_dim * 4
    h_bytes = n_pad * h_dim * 4

    # ---- Phase 1: per-feature sum and sum-of-squares (plus h) over the batch. ----
    h_act, stats = pl.pallas_call(
        _stats_kernel,
        out_shape=(jax.ShapeDtypeStruct((n_pad, h_dim), jnp.float32),
                   jax.ShapeDtypeStruct((2, h_dim), jnp.float32)),
        grid_spec=pltpu.PrefetchScalarGridSpec(
            num_scalar_prefetch=0,
            grid=(num_tiles,),
            in_specs=[x_spec, full((f, h_dim))],
            out_specs=[h_spec, full((2, h_dim))],
        ),
        compiler_params=pltpu.CompilerParams(
            dimension_semantics=("arbitrary",)),     # accumulator across the N axis
        cost_estimate=pl.CostEstimate(
            flops=mm_flops + 4 * n_pad * h_dim,
            transcendentals=0,
            bytes_accessed=x_bytes + w1_bytes + h_bytes + 2 * h_dim * 4),
    )(x, w1)

    # ---- Phase 2: normalize + ReLU + linear2 + sigmoid, independent per tile. ----
    out = pl.pallas_call(
        functools.partial(_apply_kernel, n_rows=n, c_dim=c_dim, eps=eps),
        out_shape=jax.ShapeDtypeStruct((n_pad, c_dim), jnp.float32),
        grid_spec=pltpu.PrefetchScalarGridSpec(
            num_scalar_prefetch=0,
            grid=(num_tiles,),
            in_specs=[h_spec, full((3 + c_dim, h_dim)), full((2, h_dim))],
            out_specs=pl.BlockSpec((tile_n, c_dim), lambda i: (i, 0)),
        ),
        compiler_params=pltpu.CompilerParams(
            dimension_semantics=("parallel",)),      # both TensorCores on v7x
        cost_estimate=pl.CostEstimate(
            flops=n_pad * h_dim * (8 + 2 * c_dim),
            transcendentals=n_pad * c_dim,
            bytes_accessed=h_bytes + (5 + c_dim) * h_dim * 4 + n_pad * c_dim * 4),
    )(h_act, packed, stats)

    return out[:n]


def init_params(key, gnn_output_dim, cat_dim=1):
    """Deterministic init mirroring PyTorch defaults (uniform +/- 1/sqrt(fan_in))."""
    hidden_dim = int(math.sqrt(gnn_output_dim))
    k1, k2, k3, k4 = jax.random.split(key, 4)

    bound1 = 1.0 / math.sqrt(gnn_output_dim)
    w1 = jax.random.uniform(k1, (gnn_output_dim, hidden_dim), jnp.float32,
                            -bound1, bound1)
    b1 = jax.random.uniform(k2, (1, hidden_dim), jnp.float32, -bound1, bound1)

    gamma = jnp.ones((1, hidden_dim), jnp.float32)   # BatchNorm1d weight
    beta = jnp.zeros((1, hidden_dim), jnp.float32)   # BatchNorm1d bias

    bound2 = 1.0 / math.sqrt(hidden_dim)
    w2 = jax.random.uniform(k3, (hidden_dim, cat_dim), jnp.float32,
                            -bound2, bound2)
    b2 = jax.random.uniform(k4, (1, cat_dim), jnp.float32, -bound2, bound2)

    return w1, b1, gamma, beta, w2, b2


def reference_forward(x, w1, b1, gamma, beta, w2, b2):
    """Pure-JAX reference faithful to the PyTorch module (keeps b1, exp-sigmoid)."""
    h = x @ w1 + b1
    mean = jnp.mean(h, axis=0, keepdims=True)
    var = jnp.mean((h - mean) ** 2, axis=0, keepdims=True)
    h = (h - mean) / jnp.sqrt(var + 1e-5) * gamma + beta
    h = jnp.maximum(h, 0.0)
    return jax.nn.sigmoid(h @ w2 + b2)


if __name__ == "__main__":
    key = jax.random.PRNGKey(0)
    kx, kp = jax.random.split(key)

    GNN_OUTPUT_DIM = 256          # -> hidden_dim = int(sqrt(256)) = 16
    CAT_DIM = 1
    N = 200                       # not a multiple of the tile -> exercises padding path

    x = jax.random.normal(kx, (N, GNN_OUTPUT_DIM), jnp.float32)
    params = init_params(kp, GNN_OUTPUT_DIM, CAT_DIM)

    out = node_classifier_forward(x, *params, tile_n=64)   # 4 tiles over N
    out = jax.block_until_ready(out)

    ref = reference_forward(x, *params)
    assert out.shape == (N, CAT_DIM)
    max_err = float(jnp.max(jnp.abs(out - ref)))
    assert max_err < 1e-4, f"mismatch vs reference: max |diff| = {max_err}"

    print("KERNEL_OK")
</pallas_src>

<mosaic_0001>
module attributes {stable_mosaic.version = 11 : i64} {
  func.func @_stats_kernel(%arg0: i32, %arg1: memref<64x256xf32, #tpu.memory_space<vmem>>, %arg2: memref<256x16xf32, #tpu.memory_space<vmem>>, %arg3: memref<64x16xf32, #tpu.memory_space<vmem>>, %arg4: memref<2x16xf32, #tpu.memory_space<vmem>>) attributes {dimension_semantics = [#tpu.dimension_semantics<arbitrary>], iteration_bounds = array<i64: 4>, scalar_prefetch = 0 : i64, scratch_operands = 0 : i64, tpu.core_type = #tpu.core_type<tc>, window_params = [{transform_indices = @transform_0, window_bounds = array<i64: 64, 256>}, {pipeline_mode = #tpu.pipeline_mode<synchronous>, transform_indices = @transform_1, window_bounds = array<i64: 256, 16>}, {transform_indices = @transform_2, window_bounds = array<i64: 64, 16>}, {pipeline_mode = #tpu.pipeline_mode<synchronous>, transform_indices = @transform_3, window_bounds = array<i64: 2, 16>}]} {
    %c0 = arith.constant 0 : index
    %c0_0 = arith.constant 0 : index
    %0 = vector.load %arg1[%c0, %c0_0] : memref<64x256xf32, #tpu.memory_space<vmem>>, vector<64x256xf32>
    %c0_1 = arith.constant 0 : index
    %c0_2 = arith.constant 0 : index
    %1 = vector.load %arg2[%c0_1, %c0_2] : memref<256x16xf32, #tpu.memory_space<vmem>>, vector<256x16xf32>
    %cst = arith.constant dense<0.000000e+00> : vector<64x16xf32>
    %2 = tpu.matmul %0, %1, %cst {dimension_numbers = #tpu.dot_dimension_numbers<[1], [0], [0], [1], [0, 0, 1, 1], [], []>} : vector<64x256xf32>, vector<256x16xf32>, vector<64x16xf32> -> vector<64x16xf32>
    %c0_3 = arith.constant 0 : index
    %c0_4 = arith.constant 0 : index
    %3 = vector.load %arg3[%c0_3, %c0_4] : memref<64x16xf32, #tpu.memory_space<vmem>>, vector<64x16xf32>
    tpu.vector_store %arg3[%c0_3, %c0_4], %2 {strides = array<i32>} : memref<64x16xf32, #tpu.memory_space<vmem>>, vector<64x16xf32>,
    %cst_5 = arith.constant dense<0.000000e+00> : vector<16xf32>
    %4 = vector.multi_reduction <add>, %2, %cst_5 [0] : vector<64x16xf32> to vector<16xf32>
    %5 = vector.shape_cast %4 : vector<16xf32> to vector<1x16xf32>
    %6 = arith.mulf %2, %2 : vector<64x16xf32>
    %cst_6 = arith.constant dense<0.000000e+00> : vector<16xf32>
    %7 = vector.multi_reduction <add>, %6, %cst_6 [0] : vector<64x16xf32> to vector<16xf32>
    %8 = vector.shape_cast %7 : vector<16xf32> to vector<1x16xf32>
    %c0_i32 = arith.constant 0 : i32
    %9 = arith.cmpi eq, %arg0, %c0_i32 : i32
    %10 = arith.extui %9 : i1 to i32
    %c0_i32_7 = arith.constant 0 : i32
    %11 = arith.cmpi ne, %10, %c0_i32_7 : i32
    scf.if %11 {
      %cst_15 = arith.constant 0.000000e+00 : f32
      %18 = vector.broadcast %cst_15 : f32 to vector<2x16xf32>
      %c0_16 = arith.constant 0 : index
      %c0_17 = arith.constant 0 : index
      %19 = vector.load %arg4[%c0_16, %c0_17] : memref<2x16xf32, #tpu.memory_space<vmem>>, vector<2x16xf32>
      tpu.vector_store %arg4[%c0_16, %c0_17], %18 {strides = array<i32>} : memref<2x16xf32, #tpu.memory_space<vmem>>, vector<2x16xf32>,
    } else {
    }
    %c0_8 = arith.constant 0 : index
    %c0_9 = arith.constant 0 : index
    %12 = vector.load %arg4[%c0_8, %c0_9] : memref<2x16xf32, #tpu.memory_space<vmem>>, vector<1x16xf32>
    %13 = arith.addf %12, %5 : vector<1x16xf32>
    %c0_10 = arith.constant 0 : index
    %c0_11 = arith.constant 0 : index
    %14 = vector.load %arg4[%c0_10, %c0_11] : memref<2x16xf32, #tpu.memory_space<vmem>>, vector<1x16xf32>
    tpu.vector_store %arg4[%c0_10, %c0_11], %13 {strides = array<i32>} : memref<2x16xf32, #tpu.memory_space<vmem>>, vector<1x16xf32>,
    %c1 = arith.constant 1 : index
    %c0_12 = arith.constant 0 : index
    %15 = vector.load %arg4[%c1, %c0_12] : memref<2x16xf32, #tpu.memory_space<vmem>>, vector<1x16xf32>
    %16 = arith.addf %15, %8 : vector<1x16xf32>
    %c1_13 = arith.constant 1 : index
    %c0_14 = arith.constant 0 : index
    %17 = vector.load %arg4[%c1_13, %c0_14] : memref<2x16xf32, #tpu.memory_space<vmem>>, vector<1x16xf32>
    tpu.vector_store %arg4[%c1_13, %c0_14], %16 {strides = array<i32>} : memref<2x16xf32, #tpu.memory_space<vmem>>, vector<1x16xf32>,
    return
  }
  func.func @transform_0(%arg0: i32) -> (i32, i32) {
    %c0_i32 = arith.constant 0 : i32
    %c0_i32_0 = arith.constant 0 : i32
    return %arg0, %c0_i32 : i32, i32
  }
  func.func @transform_1(%arg0: i32) -> (i32, i32) {
    %c0_i32 = arith.constant 0 : i32
    %c0_i32_0 = arith.constant 0 : i32
    %c0_i32_1 = arith.constant 0 : i32
    return %c0_i32, %c0_i32_0 : i32, i32
  }
  func.func @transform_2(%arg0: i32) -> (i32, i32) {
    %c0_i32 = arith.constant 0 : i32
    %c0_i32_0 = arith.constant 0 : i32
    return %arg0, %c0_i32 : i32, i32
  }
  func.func @transform_3(%arg0: i32) -> (i32, i32) {
    %c0_i32 = arith.constant 0 : i32
    %c0_i32_0 = arith.constant 0 : i32
    %c0_i32_1 = arith.constant 0 : i32
    return %c0_i32, %c0_i32_0 : i32, i32
  }
}

</mosaic_0001>

<llo_original>
// kernel: tpu_custom_call.1
$region0: #{tpu_custom_call.1}
  #allocation0 [shape = 'u32[]', space=smem, size = 0x4, offset = 0x4, fixed_abs, tag = 'smem constant byte address 0x4 - core index']
  #allocation1 [shape = 'u32[144,128]{1,0:T(1,128)}', space=vmem, size = 0x12000, scoped, tag = 'internal scratch']
  %s0 = inlined_call_operand.hbm [shape: f32[256,256], index: 0, kind: input, shape index: {}]
  %s1 = inlined_call_operand.vmem [shape: f32[256,16], index: 1, kind: input, shape index: {}]
  %s2 = inlined_call_operand.vmem [shape: f32[256,16], index: 2, kind: output, shape index: {0}]
  %s3 = inlined_call_operand.hbm [shape: f32[2,16], index: 3, kind: output, shape index: {1}]
  %4 = xla_tuple %s2, %s3
  %s5 = sld [smem:[#allocation0]]
  $region57: #{tpu_custom_call.1} parent=0
    _
  %s7 = ssub.s32 1, %s5
  %s8 = scalar_select 0, %s7, %s5
  $region1: #{tpu_custom_call.1} parent=0
    #allocation2 [shape = 'u8[131072]{0}', space=vmem, size = 0x20000, scoped, tag = 'input window, operand 0']
    #allocation3 [shape = 's32[2]{0}', space=sflag, size = 0x8, scoped, tag = 'scoped memory for tpu_custom_call.1']
    #allocation4 [shape = 's32[2]{0}', space=sflag, size = 0x8, scoped, tag = 'scoped memory for tpu_custom_call.1']
    #allocation5 [shape = 'u8[1024]{0}', space=vmem, size = 0x400, scoped, tag = 'output window, operand 1, single buffered']
    %9 = vsyncpa [#allocation3], 0
    %s10 = scalar_lea.sflag [#allocation3], 1
    %11 = vsyncpa %s10, 0
    %12 = vsyncpa [#allocation4], 0
    loop: start=0, step=1, limit=6
    $region2: #{tpu_custom_call.1} parent=1 // loop_pre_header
      _
    $region3: #{tpu_custom_call.1} parent=1 // loop_header
      %s14 = sphi 0, %s18
      %p15 = scmp.ge.s32.totalorder %s14, 6
      %s24 = sphi 0, %s26
      %s27 = sphi 0, %s24
      %s28 = sphi 0, %s27
      %s44 = sphi 0, %s28
      %s48 = sphi 0, %s48
      %s50 = sphi 0, %s48
      %s51 = sphi 0, %s50
      %s65 = sphi 0, %s51
      %s71 = sphi 0, %s73
      %s74 = sphi 0, %s71
      %s75 = sphi 0, %s74
      %s91 = sphi 0, %s75
      %s95 = sphi 0, %s95
      %s97 = sphi 0, %s95
      %s98 = sphi 0, %s97
      %s112 = sphi 0, %s98
    $region4: #{tpu_custom_call.1} parent=1 // loop_header_branch
      %17 = sbr.rel (%p15) target = $region8
    $region5: #{tpu_custom_call.1} parent=1 // loop_body
      %s19 = ssub.s32 %s14, 1
      %s20 = ssub.s32 %s14, 2
      %s21 = sadd.s32 %s14, 1
      %s22 = ssub.s32 %s14, %s21
      %p23 = scmp.eq.s32.totalorder %s22, 0
      %s25 = sadd.s32 %s24, 1
      %s26 = scalar_select %p23, %s24, %s25
      %p29 = pneg %p23
      %p30 = scmp.eq.s32.totalorder %s14, 3
      %p31 = por %p29, %p30
      %p32 = scmp.ne.s32.totalorder %s24, %s27
      %p33 = scmp.eq.s32.totalorder %s14, 0
      %p34 = por %p32, %p33
      %p35 = scmp.ne.s32.totalorder %s24, %s27
      %p36 = scmp.eq.s32.totalorder %s19, 3
      %p37 = por %p35, %p36
      %p38 = scmp.ne.s32.totalorder %s27, %s28
      %p39 = scmp.eq.s32.totalorder %s19, 0
      %p40 = por %p38, %p39
      %p41 = scmp.ne.s32.totalorder %s27, %s28
      %p42 = scmp.eq.s32.totalorder %s20, 3
      %p43 = por %p41, %p42
      %p45 = scmp.ne.s32.totalorder %s28, %s44
      %p46 = scmp.eq.s32.totalorder %s20, 0
      %p47 = por %p45, %p46
      %s49 = sadd.s32 %s48, 1
      %p52 = scmp.eq.s32.totalorder %s14, 3
      %p53 = scmp.ne.s32.totalorder %s48, %s50
      %p54 = scmp.eq.s32.totalorder %s14, 0
      %p55 = por %p53, %p54
      %p56 = scmp.ne.s32.totalorder %s48, %s50
      %p57 = scmp.eq.s32.totalorder %s19, 3
      %p58 = por %p56, %p57
      %p59 = scmp.ne.s32.totalorder %s50, %s51
      %p60 = scmp.eq.s32.totalorder %s19, 0
      %p61 = por %p59, %p60
      %p62 = scmp.ne.s32.totalorder %s50, %s51
      %p63 = scmp.eq.s32.totalorder %s20, 3
      %p64 = por %p62, %p63
      %p66 = scmp.ne.s32.totalorder %s51, %s65
      %p67 = scmp.eq.s32.totalorder %s20, 0
      %p68 = por %p66, %p67
      %s69 = ssub.s32 %s14, %s21
      %p70 = scmp.eq.s32.totalorder %s69, 0
      %s72 = sadd.s32 %s71, 1
      %s73 = scalar_select %p70, %s71, %s72
      %p76 = pneg %p70
      %p77 = scmp.eq.s32.totalorder %s14, 3
      %p78 = por %p76, %p77
      %p79 = scmp.ne.s32.totalorder %s71, %s74
      %p80 = scmp.eq.s32.totalorder %s14, 0
      %p81 = por %p79, %p80
      %p82 = scmp.ne.s32.totalorder %s71, %s74
      %p83 = scmp.eq.s32.totalorder %s19, 3
      %p84 = por %p82, %p83
      %p85 = scmp.ne.s32.totalorder %s74, %s75
      %p86 = scmp.eq.s32.totalorder %s19, 0
      %p87 = por %p85, %p86
      %p88 = scmp.ne.s32.totalorder %s74, %s75
      %p89 = scmp.eq.s32.totalorder %s20, 3
      %p90 = por %p88, %p89
      %p92 = scmp.ne.s32.totalorder %s75, %s91
      %p93 = scmp.eq.s32.totalorder %s20, 0
      %p94 = por %p92, %p93
      %s96 = sadd.s32 %s95, 1
      %p99 = scmp.eq.s32.totalorder %s14, 3
      %p100 = scmp.ne.s32.totalorder %s95, %s97
      %p101 = scmp.eq.s32.totalorder %s14, 0
      %p102 = por %p100, %p101
      %p103 = scmp.ne.s32.totalorder %s95, %s97
      %p104 = scmp.eq.s32.totalorder %s19, 3
      %p105 = por %p103, %p104
      %p106 = scmp.ne.s32.totalorder %s97, %s98
      %p107 = scmp.eq.s32.totalorder %s19, 0
      %p108 = por %p106, %p107
      %p109 = scmp.ne.s32.totalorder %s97, %s98
      %p110 = scmp.eq.s32.totalorder %s20, 3
      %p111 = por %p109, %p110
      %p113 = scmp.ne.s32.totalorder %s98, %s112
      %p114 = scmp.eq.s32.totalorder %s20, 0
      %p115 = por %p113, %p114
      %p116 = scmp.le.s32.totalorder 1, %s14
      %p117 = scmp.lt.s32.totalorder %s14, 5
      %p118 = pnand %p116, %p117
      %p119 = pneg %p118
      // Predicated region
      $region9: #{tpu_custom_call.1} parent=5 // pred_check
        _
      $region10: #{tpu_custom_call.1} parent=5 // pred_check_branch
        %121 = sbr.rel (%p118) target = $region12
      $region11: #{tpu_custom_call.1} parent=5 // pred_region
        %s122 = ssub.s32 %s14, 1
        // Predicated region
        $region13: #{tpu_custom_call.1} parent=11 // pred_check
          %p123 = pneg %p61
        $region14: #{tpu_custom_call.1} parent=11 // pred_check_branch
          %125 = sbr.rel (%p123) target = $region16
        $region15: #{tpu_custom_call.1} parent=11 // pred_region
          _
        $region16: #{tpu_custom_call.1} parent=11 // pred_fallthru
          _
      $region12: #{tpu_custom_call.1} parent=5 // pred_fallthru
        _
      %p126 = scmp.lt.s32.totalorder %s14, 4
      // Predicated region
      $region17: #{tpu_custom_call.1} parent=5 // pred_check
        %p127 = pneg %p126
      $region18: #{tpu_custom_call.1} parent=5 // pred_check_branch
        %129 = sbr.rel (%p127) target = $region20
      $region19: #{tpu_custom_call.1} parent=5 // pred_region
        // Predicated region
        $region21: #{tpu_custom_call.1} parent=19 // pred_check
          %p130 = pneg %p34
        $region22: #{tpu_custom_call.1} parent=19 // pred_check_branch
          %132 = sbr.rel (%p130) target = $region24
        $region23: #{tpu_custom_call.1} parent=19 // pred_region
          %s133 = sand.u32 %s24, 1
          %s134 = scalar_lea.sflag [#allocation3], %s133
          %s135 = sand.u32 %s24, 1
          %s136 = smul.addr %s135, 128
          %s137 = scalar_lea.vmem [#allocation2], %s136
          %s138 = smul.u32 8, %s14
          %s140 = ssub.s32 2048, 2048
          %141 = vsyncadd %s134, %s140
          %s142 = smul.addr %s138, 2
          %s143 = smul.addr %s142, 128
          %s144 = scalar_lea.hbm %s0, %s143
          %s145 = sshll.u32 %s137, 4
          %s146 = int_to_ptr.vmem [resolvable:$true] %s145
          %151 = dma.hbm_to_vmem [thread:$0]  %s144, 2048, %s146, %s134, 256, 256, 16
        $region24: #{tpu_custom_call.1} parent=19 // pred_fallthru
          _
      $region20: #{tpu_custom_call.1} parent=5 // pred_fallthru
        _
      %p152 = scmp.le.s32.totalorder 1, %s14
      %p153 = scmp.lt.s32.totalorder %s14, 5
      %p154 = pnand %p152, %p153
      %p155 = pneg %p154
      // Predicated region
      $region25: #{tpu_custom_call.1} parent=5 // pred_check
        _
      $region26: #{tpu_custom_call.1} parent=5 // pred_check_branch
        %157 = sbr.rel (%p154) target = $region28
      $region27: #{tpu_custom_call.1} parent=5 // pred_region
        %s158 = ssub.s32 %s14, 1
        %s159 = sand.u32 %s27, 1
        %s160 = scalar_lea.sflag [#allocation3], %s159
        %s161 = sand.u32 %s27, 1
        %s162 = smul.addr %s161, 128
        %s163 = scalar_lea.vmem [#allocation2], %s162
        // Predicated region
        $region29: #{tpu_custom_call.1} parent=27 // pred_check
          %p164 = pneg %p40
        $region30: #{tpu_custom_call.1} parent=27 // pred_check_branch
          %166 = sbr.rel (%p164) target = $region32
        $region31: #{tpu_custom_call.1} parent=27 // pred_region
          %167 = dma.done %s160, 2048
        $region32: #{tpu_custom_call.1} parent=27 // pred_fallthru
          _
        %s168 = sand.u32 %s27, 1
        %s169 = scalar_lea.sflag [#allocation3], %s168
        %s170 = sand.u32 %s27, 1
        %s171 = smul.addr %s170, 128
        %s172 = scalar_lea.vmem [#allocation2], %s171
        %p173 = pneg %p40
        %p174 = pneg %p37
        %p175 = pneg %p61
        %p176 = pneg %p58
        %p177 = pneg %p87
        %p178 = pneg %p84
        %s179 = smul.u32 8, %s19
        %p180 = scmp.lt.s32.totalorder %s179, 31
        %s181 = scalar_select %p180, %s179, 31
        %s182 = smul.addr %s181, 8
        %s183 = scalar_lea.vmem %s2, %s182
        %p184 = pneg %p108
        %p185 = pneg %p105
        %s186 = smul.u32 8, %s19
        %s187 = smul.u32 8, %s19
        %p188 = scmp.lt.s32.totalorder %s187, 31
        %s189 = scalar_select %p188, %s187, 31
        %s190 = smul.addr %s189, 8
        %s191 = scalar_lea.vmem %s2, %s190
        %s192 = smul.u32 8, %s19
        %v193 = vld [vmem:[%s163] sm:$0xff]
        %v194 = vld [vmem:[%s163 + $0x8] sm:$0xff]
        %v195 = vld [vmem:[%s163 + $0x10] sm:$0xff]
        %v196 = vld [vmem:[%s163 + $0x18] sm:$0xff]
        %v197 = vld [vmem:[%s163 + $0x20] sm:$0xff]
        %v198 = vld [vmem:[%s163 + $0x28] sm:$0xff]
        %v199 = vld [vmem:[%s163 + $0x30] sm:$0xff]
        %v200 = vld [vmem:[%s163 + $0x38] sm:$0xff]
        %v201 = vld [vmem:[%s163 + $0x40] sm:$0xff]
        %v202 = vld [vmem:[%s163 + $0x48] sm:$0xff]
        %v203 = vld [vmem:[%s163 + $0x50] sm:$0xff]
        %v204 = vld [vmem:[%s163 + $0x58] sm:$0xff]
        %v205 = vld [vmem:[%s163 + $0x60] sm:$0xff]
        %v206 = vld [vmem:[%s163 + $0x68] sm:$0xff]
        %v207 = vld [vmem:[%s163 + $0x70] sm:$0xff]
        %v208 = vld [vmem:[%s163 + $0x78] sm:$0xff]
        %v209 = vld [vmem:[%s1] sm:$0xff]
        %v210 = vld [vmem:[%s1 + $0x8] sm:$0xff]
        %v211 = vld [vmem:[%s1 + $0x10] sm:$0xff]
        %v212 = vld [vmem:[%s1 + $0x18] sm:$0xff]
        %v213 = vld [vmem:[%s1 + $0x20] sm:$0xff]
        %v214 = vld [vmem:[%s1 + $0x28] sm:$0xff]
        %v215 = vld [vmem:[%s1 + $0x30] sm:$0xff]
        %v216 = vld [vmem:[%s1 + $0x38] sm:$0xff]
        %v217 = vld [vmem:[%s1 + $0x40] sm:$0xff]
        %v218 = vld [vmem:[%s1 + $0x48] sm:$0xff]
        %v219 = vld [vmem:[%s1 + $0x50] sm:$0xff]
        %v220 = vld [vmem:[%s1 + $0x58] sm:$0xff]
        %v221 = vld [vmem:[%s1 + $0x60] sm:$0xff]
        %v222 = vld [vmem:[%s1 + $0x68] sm:$0xff]
        %v223 = vld [vmem:[%s1 + $0x70] sm:$0xff]
        %v224 = vld [vmem:[%s1 + $0x78] sm:$0xff]
        %v225 = vld [vmem:[%s1 + $0x80] sm:$0xff]
        %v226 = vld [vmem:[%s1 + $0x88] sm:$0xff]
        %v227 = vld [vmem:[%s1 + $0x90] sm:$0xff]
        %v228 = vld [vmem:[%s1 + $0x98] sm:$0xff]
        %v229 = vld [vmem:[%s1 + $0xa0] sm:$0xff]
        %v230 = vld [vmem:[%s1 + $0xa8] sm:$0xff]
        %v231 = vld [vmem:[%s1 + $0xb0] sm:$0xff]
        %v232 = vld [vmem:[%s1 + $0xb8] sm:$0xff]
        %v233 = vld [vmem:[%s1 + $0xc0] sm:$0xff]
        %v234 = vld [vmem:[%s1 + $0xc8] sm:$0xff]
        %v235 = vld [vmem:[%s1 + $0xd0] sm:$0xff]
        %v236 = vld [vmem:[%s1 + $0xd8] sm:$0xff]
        %v237 = vld [vmem:[%s1 + $0xe0] sm:$0xff]
        %v238 = vld [vmem:[%s1 + $0xe8] sm:$0xff]
        %v239 = vld [vmem:[%s1 + $0xf0] sm:$0xff]
        %v240 = vld [vmem:[%s1 + $0xf8] sm:$0xff]
        %241 = vmatprep.subr.mxu0 0.0
        %242 = vmatpush1.msra.mxu0 %v209
        %243 = vmatprep.subr.mxu0 0.0
        %244 = vmatpush1.msra.mxu0 %v210
        %245 = vmatprep.subr.mxu0 0.0
        %246 = vmatpush1.msra.mxu0 %v211
        %247 = vmatprep.subr.mxu0 0.0
        %248 = vmatpush1.msra.mxu0 %v212
        %249 = vmatprep.subr.mxu0 0.0
        %250 = vmatpush1.msra.mxu0 %v213
        %251 = vmatprep.subr.mxu0 0.0
        %252 = vmatpush1.msra.mxu0 %v214
        %253 = vmatprep.subr.mxu0 0.0
        %254 = vmatpush1.msra.mxu0 %v215
        %255 = vmatprep.subr.mxu0 0.0
        %256 = vmatpush1.msra.mxu0 %v216
        %257 = vmatprep.subr.mxu0 0.0
        %258 = vmatpush1.msra.mxu0 %v217
        %259 = vmatprep.subr.mxu0 0.0
        %260 = vmatpush1.msra.mxu0 %v218
        %261 = vmatprep.subr.mxu0 0.0
        %262 = vmatpush1.msra.mxu0 %v219
        %263 = vmatprep.subr.mxu0 0.0
        %264 = vmatpush1.msra.mxu0 %v220
        %265 = vmatprep.subr.mxu0 0.0
        %266 = vmatpush1.msra.mxu0 %v221
        %267 = vmatprep.subr.mxu0 0.0
        %268 = vmatpush1.msra.mxu0 %v222
        %269 = vmatprep.subr.mxu0 0.0
        %270 = vmatpush1.msra.mxu0 %v223
        %271 = vmatprep.subr.mxu0 0.0
        %272 = vmatpush1.msra.mxu0 %v224
        %273 = vmatprep.subr.mxu0 0.0
        %274 = vmatpush1.msra.mxu0 %v225
        %275 = vmatprep.subr.mxu0 0.0
        %276 = vmatpush1.msra.mxu0 %v226
        %277 = vmatprep.subr.mxu0 0.0
        %278 = vmatpush1.msra.mxu0 %v227
        %279 = vmatprep.subr.mxu0 0.0
        %280 = vmatpush1.msra.mxu0 %v228
        %281 = vmatprep.subr.mxu0 0.0
        %282 = vmatpush1.msra.mxu0 %v229
        %283 = vmatprep.subr.mxu0 0.0
        %284 = vmatpush1.msra.mxu0 %v230
        %285 = vmatprep.subr.mxu0 0.0
        %286 = vmatpush1.msra.mxu0 %v231
        %287 = vmatprep.subr.mxu0 0.0
        %288 = vmatpush1.msra.mxu0 %v232
        %289 = vmatprep.subr.mxu0 0.0
        %290 = vmatpush1.msra.mxu0 %v233
        %291 = vmatprep.subr.mxu0 0.0
        %292 = vmatpush1.msra.mxu0 %v234
        %293 = vmatprep.subr.mxu0 0.0
        %294 = vmatpush1.msra.mxu0 %v235
        %295 = vmatprep.subr.mxu0 0.0
        %296 = vmatpush1.msra.mxu0 %v236
        %297 = vmatprep.subr.mxu0 0.0
        %298 = vmatpush1.msra.mxu0 %v237
        %299 = vmatprep.subr.mxu0 0.0
        %300 = vmatpush1.msra.mxu0 %v238
        %301 = vmatprep.subr.mxu0 0.0
        %302 = vmatpush1.msra.mxu0 %v239
        %303 = vmatprep.subr.mxu0 0.0
        %304 = vmatpush1.msra.mxu0 %v240
        %305 = vmatprep.mubr.f32.mxu0 %v194
        %306 = vmatmul.mubr.f32.gmra.mrb[0].mxu0 %v193
        %v307 = vpop.f32.mrb[0].mxu0
        %v308 = vadd.f32 0.0, %v307
        %v309 = vpop.f32.mrb[0].mxu0
        %310 = vmatprep.mubr.f32.mxu0 %v196
        %311 = vmatmul.mubr.f32.gmra.mrb[0].mxu0 %v195
        %v312 = vpop.f32.mrb[0].mxu0
        %v313 = vadd.f32 0.0, %v312
        %v314 = vpop.f32.mrb[0].mxu0
        %315 = vmatprep.mubr.f32.mxu0 %v198
        %316 = vmatmul.mubr.f32.gmra.mrb[0].mxu0 %v197
        %v317 = vpop.f32.mrb[0].mxu0
        %v318 = vadd.f32 0.0, %v317
        %v319 = vpop.f32.mrb[0].mxu0
        %320 = vmatprep.mubr.f32.mxu0 %v200
        %321 = vmatmul.mubr.f32.gmra.mrb[0].mxu0 %v199
        %v322 = vpop.f32.mrb[0].mxu0
        %v323 = vadd.f32 0.0, %v322
        %v324 = vpop.f32.mrb[0].mxu0
        %325 = vmatprep.mubr.f32.mxu0 %v202
        %326 = vmatmul.mubr.f32.gmra.mrb[0].mxu0 %v201
        %v327 = vpop.f32.mrb[0].mxu0
        %v328 = vadd.f32 0.0, %v327
        %v329 = vpop.f32.mrb[0].mxu0
        %330 = vmatprep.mubr.f32.mxu0 %v204
        %331 = vmatmul.mubr.f32.gmra.mrb[0].mxu0 %v203
        %v332 = vpop.f32.mrb[0].mxu0
        %v333 = vadd.f32 0.0, %v332
        %v334 = vpop.f32.mrb[0].mxu0
        %335 = vmatprep.mubr.f32.mxu0 %v206
        %336 = vmatmul.mubr.f32.gmra.mrb[0].mxu0 %v205
        %v337 = vpop.f32.mrb[0].mxu0
        %v338 = vadd.f32 0.0, %v337
        %v339 = vpop.f32.mrb[0].mxu0
        %340 = vmatprep.mubr.f32.mxu0 %v208
        %341 = vmatmul.mubr.f32.gmra.mrb[0].mxu0 %v207
        %v342 = vpop.f32.mrb[0].mxu0
        %v343 = vadd.f32 0.0, %v342
        %v344 = vpop.f32.mrb[0].mxu0
        %345 = vdwg.mxu0
        %vm346 = vcmask 130048
        %347 = vst.msk [vmem:[%s191] sm:$0xff] %vm346, %v308
        %348 = vst.msk [vmem:[%s191 + $0x8] sm:$0xff] %vm346, %v313
        %349 = vst.msk [vmem:[%s191 + $0x10] sm:$0xff] %vm346, %v318
        %350 = vst.msk [vmem:[%s191 + $0x18] sm:$0xff] %vm346, %v323
        %351 = vst.msk [vmem:[%s191 + $0x20] sm:$0xff] %vm346, %v328
        %352 = vst.msk [vmem:[%s191 + $0x28] sm:$0xff] %vm346, %v333
        %353 = vst.msk [vmem:[%s191 + $0x30] sm:$0xff] %vm346, %v338
        %354 = vst.msk [vmem:[%s191 + $0x38] sm:$0xff] %vm346, %v343
        %v355 = vsel %vm346, %v308, 0.0
        %v356 = vsel %vm346, %v313, 0.0
        %v357 = vadd.f32 %v355, %v356
        %v358 = vsel %vm346, %v318, 0.0
        %v359 = vadd.f32 %v357, %v358
        %v360 = vsel %vm346, %v323, 0.0
        %v361 = vadd.f32 %v359, %v360
        %v362 = vsel %vm346, %v328, 0.0
        %v363 = vadd.f32 %v361, %v362
        %v364 = vsel %vm346, %v333, 0.0
        %v365 = vadd.f32 %v363, %v364
        %v366 = vsel %vm346, %v338, 0.0
        %v367 = vadd.f32 %v365, %v366
        %v368 = vsel %vm346, %v343, 0.0
        %v369 = vadd.f32 %v367, %v368
        %v370 = vrot.slane %v369, 4
        %v371 = vadd.f32 %v369, %v370
        %v372 = vrot.slane %v371, 2
        %v373 = vadd.f32 %v371, %v372
        %v374 = vrot.slane %v373, 1
        %v375 = vadd.f32 %v373, %v374
        %v376 = vmul.f32 %v308, %v308
        %v377 = vmul.f32 %v313, %v313
        %v378 = vmul.f32 %v318, %v318
        %v379 = vmul.f32 %v323, %v323
        %v380 = vmul.f32 %v328, %v328
        %v381 = vmul.f32 %v333, %v333
        %v382 = vmul.f32 %v338, %v338
        %v383 = vmul.f32 %v343, %v343
        %v384 = vsel %vm346, %v376, 0.0
        %v385 = vsel %vm346, %v377, 0.0
        %v386 = vadd.f32 %v384, %v385
        %v387 = vsel %vm346, %v378, 0.0
        %v388 = vadd.f32 %v386, %v387
        %v389 = vsel %vm346, %v379, 0.0
        %v390 = vadd.f32 %v388, %v389
        %v391 = vsel %vm346, %v380, 0.0
        %v392 = vadd.f32 %v390, %v391
        %v393 = vsel %vm346, %v381, 0.0
        %v394 = vadd.f32 %v392, %v393
        %v395 = vsel %vm346, %v382, 0.0
        %v396 = vadd.f32 %v394, %v395
        %v397 = vsel %vm346, %v383, 0.0
        %v398 = vadd.f32 %v396, %v397
        %v399 = vrot.slane %v398, 4
        %v400 = vadd.f32 %v398, %v399
        %v401 = vrot.slane %v400, 2
        %v402 = vadd.f32 %v400, %v401
        %v403 = vrot.slane %v402, 1
        %v404 = vadd.f32 %v402, %v403
        %p405 = scmp.eq.s32.totalorder %s19, 0
        // Predicated region
        $region33: #{tpu_custom_call.1} parent=27 // pred_check
          %p406 = pneg %p405
        $region34: #{tpu_custom_call.1} parent=27 // pred_check_branch
          %408 = sbr.rel (%p406) target = $region36
        $region35: #{tpu_custom_call.1} parent=27 // pred_region
          %vm409 = vcmask 123904
          %410 = vst.msk [vmem:[#allocation5] sm:$0x3] %vm409, 0.0
        $region36: #{tpu_custom_call.1} parent=27 // pred_fallthru
          _
        %v411 = vld [vmem:[#allocation5] sm:$0x1]
        %v412 = vadd.f32 %v411, %v375
        %vm413 = vcmask 122880
        %414 = vst.msk [vmem:[#allocation5] sm:$0x1] %vm413, %v412
        %v415 = vld [vmem:[#allocation5 + $0x1] sm:$0x1]
        %v416 = vadd.f32 %v415, %v404
        %417 = vst.msk [vmem:[#allocation5 + $0x1] sm:$0x1] %vm413, %v416
        %s418 = smul.u32 8, %s19
        %p419 = scmp.lt.s32.totalorder %s418, 31
        %s420 = scalar_select %p419, %s418, 31
        %s421 = smul.addr %s420, 8
        %s422 = scalar_lea.vmem %s2, %s421
        // Predicated region
        $region37: #{tpu_custom_call.1} parent=27 // pred_check
          %p423 = pneg %p84
        $region38: #{tpu_custom_call.1} parent=27 // pred_check_branch
          %425 = sbr.rel (%p423) target = $region40
        $region39: #{tpu_custom_call.1} parent=27 // pred_region
          %s426 = smul.u32 8, %s19
        $region40: #{tpu_custom_call.1} parent=27 // pred_fallthru
          _
        // Predicated region
        $region41: #{tpu_custom_call.1} parent=27 // pred_check
          %p427 = pneg %p105
        $region42: #{tpu_custom_call.1} parent=27 // pred_check_branch
          %429 = sbr.rel (%p427) target = $region44
        $region43: #{tpu_custom_call.1} parent=27 // pred_region
          %s431 = ssub.s32 32, 32
          %432 = vsyncadd [#allocation4], %s431
          %s434 = sshll.u32 [#allocation5], 4
          %s435 = int_to_ptr.vmem [resolvable:$true] %s434
          %437 = dma.vmem_to_hbm [thread:$0]  %s435, 32, %s3, [#allocation4]
        $region44: #{tpu_custom_call.1} parent=27 // pred_fallthru
          _
        // Predicated region
        $region45: #{tpu_custom_call.1} parent=27 // pred_check
          %p438 = pneg %p105
        $region46: #{tpu_custom_call.1} parent=27 // pred_check_branch
          %440 = sbr.rel (%p438) target = $region48
        $region47: #{tpu_custom_call.1} parent=27 // pred_region
          %441 = dma.done [#allocation4], 32
        $region48: #{tpu_custom_call.1} parent=27 // pred_fallthru
          _
      $region28: #{tpu_custom_call.1} parent=5 // pred_fallthru
        _
      %p442 = scmp.le.s32.totalorder 2, %s14
      // Predicated region
      $region49: #{tpu_custom_call.1} parent=5 // pred_check
        %p443 = pneg %p442
      $region50: #{tpu_custom_call.1} parent=5 // pred_check_branch
        %445 = sbr.rel (%p443) target = $region52
      $region51: #{tpu_custom_call.1} parent=5 // pred_region
        %s446 = ssub.s32 %s14, 2
        // Predicated region
        $region53: #{tpu_custom_call.1} parent=51 // pred_check
          %p447 = pneg %p90
        $region54: #{tpu_custom_call.1} parent=51 // pred_check_branch
          %449 = sbr.rel (%p447) target = $region56
        $region55: #{tpu_custom_call.1} parent=51 // pred_region
          %s450 = smul.u32 8, %s20
          %p451 = scmp.lt.s32.totalorder %s450, 31
          %s452 = scalar_select %p451, %s450, 31
          %s453 = smul.addr %s452, 8
          %s454 = scalar_lea.vmem %s2, %s453
        $region56: #{tpu_custom_call.1} parent=51 // pred_fallthru
          _
      $region52: #{tpu_custom_call.1} parent=5 // pred_fallthru
        _
    $region6: #{tpu_custom_call.1} parent=1 // loop_footer
      %s18 = sadd.s32 1, %s14
    $region7: #{tpu_custom_call.1} parent=1 // loop_footer_branch
      %13 = sbr.rel target = $region3
    $region8: #{tpu_custom_call.1} parent=1 // loop_exit
      _
    %455 = vsyncpa [#allocation3], 1
    %s456 = scalar_lea.sflag [#allocation3], 1
    %457 = vsyncpa %s456, 1
    %458 = vsyncpa [#allocation4], 1
    %s459 = scalar_lea.sflag [#allocation4], 1
    %460 = vsyncpa %s459, 1

</llo_original>
